<compile_context>
chip_gen: v7x
topology: tpu7x:2x2x1
jax: 0.10.0
libtpu: 0.0.40
codegen_flags: <defaults>
</compile_context>

<pallas_src>
import functools

import jax
import jax.numpy as jnp
from jax.experimental import pallas as pl
from jax.experimental.pallas import tpu as pltpu


def _make_kernel(W, KH, KW, n_partials, matmul_dtype):
    taps = [(kh, kw) for kh in range(KH) for kw in range(KW)]

    def kernel(x_ref, dw_ref, pw_ref, o_ref):
        # x_ref : (N*C, HWp)      whole batch, spatial flattened & lane-padded
        # dw_ref: (N*C, KH*KW)    per-row depthwise taps (dw tiled over batch)
        # pw_ref: (N*Cout, N*C)   block-diagonal pointwise weights
        # o_ref : (N*Cout, HWp)   lane-dense output slab
        x = x_ref[...].astype(jnp.float32)        # cast hoisted out of the tap loop
        dw = dw_ref[...].astype(jnp.float32)
        hwp = x.shape[1]

        # ---- depthwise conv (VALID, stride 1): roll-and-FMA on full-width rows --
        # acc[r, h*W + w] = sum_{kh,kw} x[r, (h+kh)*W + (w+kw)] * dw[r, kh*KW+kw]
        # Only positions with h < Ho and w < Wo are valid; the wrapper trims the
        # rest. pltpu.roll never mixes padded/wrapped lanes into valid positions
        # because (h+kh)*W + (w+kw) < H*W for every valid (h, w).
        partials = []
        for p in range(n_partials):
            acc_p = None
            for idx in range(p, len(taps), n_partials):
                kh, kw = taps[idx]
                s = kh * W + kw
                shifted = pltpu.roll(x, shift=(hwp - s) % hwp, axis=1) if s else x
                term = shifted * dw[:, idx:idx + 1]
                acc_p = term if acc_p is None else acc_p + term
            partials.append(acc_p)
        acc = functools.reduce(lambda a, b: a + b,
                               [p for p in partials if p is not None])

        # ---- pointwise 1x1 conv: one MXU matmul over the whole batch ----
        pw = pw_ref[...].astype(matmul_dtype)
        y = jnp.dot(pw, acc.astype(matmul_dtype),
                    preferred_element_type=jnp.float32)
        o_ref[...] = y.astype(o_ref.dtype)        # single unmasked lane-dense store

    return kernel


def separable_conv2d(x, dw_weight, pw_weight, *, matmul_dtype=jnp.float32):
    """x: (N,C,H,W); dw_weight: (C,KH,KW); pw_weight: (Cout,C) -> (N,Cout,Ho,Wo).

    VALID padding, stride 1, dilation 1, no bias (matches the PyTorch module with
    padding=0). Pass matmul_dtype=jnp.bfloat16 on v6e/v7x production shapes.
    """
    N, C, H, W = x.shape
    _, KH, KW = dw_weight.shape
    Cout = pw_weight.shape[0]
    Ho, Wo = H - KH + 1, W - KW + 1
    HW = H * W
    HWp = ((HW + 127) // 128) * 128             # lane-dense flattened spatial axis

    # Layout plumbing on contiguous axes (free views) + tiny weight prep, all
    # outside the kernel.
    x_flat = x.reshape(N * C, HW)
    if HWp != HW:
        x_flat = jnp.pad(x_flat, ((0, 0), (0, HWp - HW)))
    dw_rows = jnp.tile(dw_weight.reshape(C, KH * KW), (N, 1))          # (N*C, KH*KW)
    pw_block = jnp.kron(jnp.eye(N, dtype=pw_weight.dtype), pw_weight)  # (N*Cout, N*C)

    kernel = _make_kernel(W, KH, KW, n_partials=3, matmul_dtype=matmul_dtype)

    out_flat = pl.pallas_call(
        kernel,
        out_shape=jax.ShapeDtypeStruct((N * Cout, HWp), x.dtype),
        grid=(1,),                               # whole batch in one grid step
        in_specs=[
            pl.BlockSpec((N * C, HWp), lambda i: (0, 0)),
            pl.BlockSpec((N * C, KH * KW), lambda i: (0, 0)),
            pl.BlockSpec((N * Cout, N * C), lambda i: (0, 0)),
        ],
        out_specs=pl.BlockSpec((N * Cout, HWp), lambda i: (0, 0)),
        compiler_params=pltpu.CompilerParams(
            dimension_semantics=("arbitrary",),
        ),
    )(x_flat, dw_rows, pw_block)

    # Trim lane padding and invalid (h >= Ho or w >= Wo) positions; reshape back
    # to NCHW (layout plumbing outside the kernel).
    return out_flat[:, :HW].reshape(N, Cout, H, W)[:, :, :Ho, :Wo]


def _reference(x, dw_weight, pw_weight):
    """Pure-JAX reference matching torch semantics (NCHW, VALID, no bias)."""
    C = x.shape[1]
    Cout = pw_weight.shape[0]
    dn = ("NCHW", "OIHW", "NCHW")
    out = jax.lax.conv_general_dilated(
        x, dw_weight.reshape(C, 1, *dw_weight.shape[1:]),
        window_strides=(1, 1), padding="VALID",
        dimension_numbers=dn, feature_group_count=C)
    out = jax.lax.conv_general_dilated(
        out, pw_weight.reshape(Cout, C, 1, 1),
        window_strides=(1, 1), padding="VALID",
        dimension_numbers=dn)
    return out


if __name__ == "__main__":
    # SeparableConv2d(in_channels=4, out_channels=8, kernel_size=3, bias=False)
    N, C, H, W = 2, 4, 16, 16
    Cout, KH, KW = 8, 3, 3

    key = jax.random.PRNGKey(0)
    kx, kdw, kpw = jax.random.split(key, 3)
    x = jax.random.normal(kx, (N, C, H, W), dtype=jnp.float32)
    # deterministic parameter init (synthetic; not a checkpoint load)
    dw_weight = 0.1 * jax.random.normal(kdw, (C, KH, KW), dtype=jnp.float32)
    pw_weight = 0.1 * jax.random.normal(kpw, (Cout, C), dtype=jnp.float32)

    out = separable_conv2d(x, dw_weight, pw_weight)
    out = jax.block_until_ready(out)

    ref = jax.block_until_ready(_reference(x, dw_weight, pw_weight))
    assert out.shape == (N, Cout, H - KH + 1, W - KW + 1), out.shape
    assert jnp.allclose(out, ref, atol=1e-4, rtol=1e-4), "mismatch vs reference"

    print("KERNEL_OK")
</pallas_src>

<mosaic_0001>
module attributes {stable_mosaic.version = 11 : i64} {
  func.func @kernel(%arg0: i32, %arg1: memref<8x256xf32, #tpu.memory_space<vmem>>, %arg2: memref<8x9xf32, #tpu.memory_space<vmem>>, %arg3: memref<16x8xf32, #tpu.memory_space<vmem>>, %arg4: memref<16x256xf32, #tpu.memory_space<vmem>>) attributes {dimension_semantics = [#tpu.dimension_semantics<arbitrary>], iteration_bounds = array<i64: 1>, scalar_prefetch = 0 : i64, scratch_operands = 0 : i64, tpu.core_type = #tpu.core_type<tc>, window_params = [{pipeline_mode = #tpu.pipeline_mode<synchronous>, transform_indices = @transform_0, window_bounds = array<i64: 8, 256>}, {pipeline_mode = #tpu.pipeline_mode<synchronous>, transform_indices = @transform_1, window_bounds = array<i64: 8, 9>}, {pipeline_mode = #tpu.pipeline_mode<synchronous>, transform_indices = @transform_2, window_bounds = array<i64: 16, 8>}, {pipeline_mode = #tpu.pipeline_mode<synchronous>, transform_indices = @transform_3, window_bounds = array<i64: 16, 256>}]} {
    %c0 = arith.constant 0 : index
    %c0_0 = arith.constant 0 : index
    %0 = vector.load %arg1[%c0, %c0_0] : memref<8x256xf32, #tpu.memory_space<vmem>>, vector<8x256xf32>
    %c0_1 = arith.constant 0 : index
    %c0_2 = arith.constant 0 : index
    %1 = vector.load %arg2[%c0_1, %c0_2] : memref<8x9xf32, #tpu.memory_space<vmem>>, vector<8x9xf32>
    %2 = vector.extract_strided_slice %1 {offsets = [0, 0], sizes = [8, 1], strides = [1, 1]} : vector<8x9xf32> to vector<8x1xf32>
    %3 = vector.broadcast %2 : vector<8x1xf32> to vector<8x256xf32>
    %4 = arith.mulf %0, %3 : vector<8x256xf32>
    %c240_i32 = arith.constant 240 : i32
    %5 = tpu.dynamic_rotate %0 by %c240_i32 dim 1 : vector<8x256xf32>, i32 -> vector<8x256xf32>
    %6 = vector.extract_strided_slice %1 {offsets = [0, 3], sizes = [8, 1], strides = [1, 1]} : vector<8x9xf32> to vector<8x1xf32>
    %7 = vector.broadcast %6 : vector<8x1xf32> to vector<8x256xf32>
    %8 = arith.mulf %5, %7 : vector<8x256xf32>
    %9 = arith.addf %4, %8 : vector<8x256xf32>
    %c224_i32 = arith.constant 224 : i32
    %10 = tpu.dynamic_rotate %0 by %c224_i32 dim 1 : vector<8x256xf32>, i32 -> vector<8x256xf32>
    %11 = vector.extract_strided_slice %1 {offsets = [0, 6], sizes = [8, 1], strides = [1, 1]} : vector<8x9xf32> to vector<8x1xf32>
    %12 = vector.broadcast %11 : vector<8x1xf32> to vector<8x256xf32>
    %13 = arith.mulf %10, %12 : vector<8x256xf32>
    %14 = arith.addf %9, %13 : vector<8x256xf32>
    %c255_i32 = arith.constant 255 : i32
    %15 = tpu.dynamic_rotate %0 by %c255_i32 dim 1 : vector<8x256xf32>, i32 -> vector<8x256xf32>
    %16 = vector.extract_strided_slice %1 {offsets = [0, 1], sizes = [8, 1], strides = [1, 1]} : vector<8x9xf32> to vector<8x1xf32>
    %17 = vector.broadcast %16 : vector<8x1xf32> to vector<8x256xf32>
    %18 = arith.mulf %15, %17 : vector<8x256xf32>
    %c239_i32 = arith.constant 239 : i32
    %19 = tpu.dynamic_rotate %0 by %c239_i32 dim 1 : vector<8x256xf32>, i32 -> vector<8x256xf32>
    %20 = vector.extract_strided_slice %1 {offsets = [0, 4], sizes = [8, 1], strides = [1, 1]} : vector<8x9xf32> to vector<8x1xf32>
    %21 = vector.broadcast %20 : vector<8x1xf32> to vector<8x256xf32>
    %22 = arith.mulf %19, %21 : vector<8x256xf32>
    %23 = arith.addf %18, %22 : vector<8x256xf32>
    %c223_i32 = arith.constant 223 : i32
    %24 = tpu.dynamic_rotate %0 by %c223_i32 dim 1 : vector<8x256xf32>, i32 -> vector<8x256xf32>
    %25 = vector.extract_strided_slice %1 {offsets = [0, 7], sizes = [8, 1], strides = [1, 1]} : vector<8x9xf32> to vector<8x1xf32>
    %26 = vector.broadcast %25 : vector<8x1xf32> to vector<8x256xf32>
    %27 = arith.mulf %24, %26 : vector<8x256xf32>
    %28 = arith.addf %23, %27 : vector<8x256xf32>
    %c254_i32 = arith.constant 254 : i32
    %29 = tpu.dynamic_rotate %0 by %c254_i32 dim 1 : vector<8x256xf32>, i32 -> vector<8x256xf32>
    %30 = vector.extract_strided_slice %1 {offsets = [0, 2], sizes = [8, 1], strides = [1, 1]} : vector<8x9xf32> to vector<8x1xf32>
    %31 = vector.broadcast %30 : vector<8x1xf32> to vector<8x256xf32>
    %32 = arith.mulf %29, %31 : vector<8x256xf32>
    %c238_i32 = arith.constant 238 : i32
    %33 = tpu.dynamic_rotate %0 by %c238_i32 dim 1 : vector<8x256xf32>, i32 -> vector<8x256xf32>
    %34 = vector.extract_strided_slice %1 {offsets = [0, 5], sizes = [8, 1], strides = [1, 1]} : vector<8x9xf32> to vector<8x1xf32>
    %35 = vector.broadcast %34 : vector<8x1xf32> to vector<8x256xf32>
    %36 = arith.mulf %33, %35 : vector<8x256xf32>
    %37 = arith.addf %32, %36 : vector<8x256xf32>
    %c222_i32 = arith.constant 222 : i32
    %38 = tpu.dynamic_rotate %0 by %c222_i32 dim 1 : vector<8x256xf32>, i32 -> vector<8x256xf32>
    %39 = vector.extract_strided_slice %1 {offsets = [0, 8], sizes = [8, 1], strides = [1, 1]} : vector<8x9xf32> to vector<8x1xf32>
    %40 = vector.broadcast %39 : vector<8x1xf32> to vector<8x256xf32>
    %41 = arith.mulf %38, %40 : vector<8x256xf32>
    %42 = arith.addf %37, %41 : vector<8x256xf32>
    %43 = arith.addf %14, %28 : vector<8x256xf32>
    %44 = arith.addf %43, %42 : vector<8x256xf32>
    %c0_3 = arith.constant 0 : index
    %c0_4 = arith.constant 0 : index
    %45 = vector.load %arg3[%c0_3, %c0_4] : memref<16x8xf32, #tpu.memory_space<vmem>>, vector<16x8xf32>
    %cst = arith.constant dense<0.000000e+00> : vector<16x256xf32>
    %46 = tpu.matmul %45, %44, %cst {dimension_numbers = #tpu.dot_dimension_numbers<[1], [0], [0], [1], [0, 0, 1, 1], [], []>} : vector<16x8xf32>, vector<8x256xf32>, vector<16x256xf32> -> vector<16x256xf32>
    %c0_5 = arith.constant 0 : index
    %c0_6 = arith.constant 0 : index
    %47 = vector.load %arg4[%c0_5, %c0_6] : memref<16x256xf32, #tpu.memory_space<vmem>>, vector<16x256xf32>
    tpu.vector_store %arg4[%c0_5, %c0_6], %46 {strides = array<i32>} : memref<16x256xf32, #tpu.memory_space<vmem>>, vector<16x256xf32>,
    return
  }
  func.func @transform_0(%arg0: i32) -> (i32, i32) {
    %c0_i32 = arith.constant 0 : i32
    %c0_i32_0 = arith.constant 0 : i32
    %c0_i32_1 = arith.constant 0 : i32
    return %c0_i32, %c0_i32_0 : i32, i32
  }
  func.func @transform_1(%arg0: i32) -> (i32, i32) {
    %c0_i32 = arith.constant 0 : i32
    %c0_i32_0 = arith.constant 0 : i32
    %c0_i32_1 = arith.constant 0 : i32
    return %c0_i32, %c0_i32_0 : i32, i32
  }
  func.func @transform_2(%arg0: i32) -> (i32, i32) {
    %c0_i32 = arith.constant 0 : i32
    %c0_i32_0 = arith.constant 0 : i32
    %c0_i32_1 = arith.constant 0 : i32
    return %c0_i32, %c0_i32_0 : i32, i32
  }
  func.func @transform_3(%arg0: i32) -> (i32, i32) {
    %c0_i32 = arith.constant 0 : i32
    %c0_i32_0 = arith.constant 0 : i32
    %c0_i32_1 = arith.constant 0 : i32
    return %c0_i32, %c0_i32_0 : i32, i32
  }
}

</mosaic_0001>

<llo_original>
// kernel: tpu_custom_call.1
$region0: #{tpu_custom_call.1}
  #allocation0 [shape = 'u32[]', space=smem, size = 0x4, offset = 0x4, fixed_abs, tag = 'smem constant byte address 0x4 - core index']
  #allocation1 [shape = 'u32[144,128]{1,0:T(1,128)}', space=vmem, size = 0x12000, scoped, tag = 'internal scratch']
  %s0 = inlined_call_operand.vmem [shape: f32[8,256], index: 0, kind: input, shape index: {}]
  %s1 = inlined_call_operand.vmem [shape: f32[8,9], index: 1, kind: input, shape index: {}]
  %s2 = inlined_call_operand.vmem [shape: f32[16,8], index: 2, kind: input, shape index: {}]
  %s3 = inlined_call_operand.hbm [shape: f32[16,256], index: 3, kind: output, shape index: {}]
  %s4 = sld [smem:[#allocation0]]
  $region22: #{tpu_custom_call.1} parent=0
    _
  %s6 = ssub.s32 1, %s4
  %s7 = scalar_select 0, %s6, %s4
  $region1: #{tpu_custom_call.1} parent=0
    #allocation2 [shape = 'u8[16384]{0}', space=vmem, size = 0x4000, scoped, tag = 'output window, operand 0, single buffered']
    #allocation3 [shape = 's32[1]{0}', space=sflag, size = 0x4, scoped, tag = 'scoped memory for tpu_custom_call.1']
    %8 = vsyncpa [#allocation3], 0
    // Predicated region
    $region2: #{tpu_custom_call.1} parent=1 // pred_check
      _
    $region3: #{tpu_custom_call.1} parent=1 // pred_check_branch
      %10 = sbr.rel (0) target = $region5
    $region4: #{tpu_custom_call.1} parent=1 // pred_region
      _
    $region5: #{tpu_custom_call.1} parent=1 // pred_fallthru
      _
    // Predicated region
    $region6: #{tpu_custom_call.1} parent=1 // pred_check
      _
    $region7: #{tpu_custom_call.1} parent=1 // pred_check_branch
      %12 = sbr.rel (0) target = $region9
    $region8: #{tpu_custom_call.1} parent=1 // pred_region
      _
    $region9: #{tpu_custom_call.1} parent=1 // pred_fallthru
      _
    // Predicated region
    $region10: #{tpu_custom_call.1} parent=1 // pred_check
      _
    $region11: #{tpu_custom_call.1} parent=1 // pred_check_branch
      %14 = sbr.rel (0) target = $region13
    $region12: #{tpu_custom_call.1} parent=1 // pred_region
      _
    $region13: #{tpu_custom_call.1} parent=1 // pred_fallthru
      _
    %v15 = vld [vmem:[%s0] sm:$0xff]
    %v16 = vld [vmem:[%s0 + $0x8] sm:$0xff]
    %v17 = vld [vmem:[%s1] sm:$0xff]
    %19 = vset.pattern.permute.xlu0 0
    %20 = vperm.xlu0 %19, %v17
    %v21 = vpop.permute.xlu0 %20
    %v23 = vmul.f32 %v15, %v21
    %v24 = vmul.f32 %v16, %v21
    %25 = vrot.lane.b32.xlu0 %v15, 112
    %v26 = vpop.permute.xlu0 %25
    %27 = vrot.lane.b32.xlu0 %v16, 112
    %v28 = vpop.permute.xlu0 %27
    %v29 = vlaneseq
    %v30 = vand.u32 %v29, 127
    %vm31 = vcmp.lt.s32.totalorder %v30, 112
    %v32 = vsel %vm31, %v26, %v28
    %v33 = vsel %vm31, %v28, %v26
    %34 = vset.pattern.permute.xlu0 3
    %35 = vperm.xlu0 %34, %v17
    %v36 = vpop.permute.xlu0 %35
    %v38 = vmul.f32 %v32, %v36
    %v39 = vmul.f32 %v33, %v36
    %v40 = vadd.f32 %v23, %v38
    %v41 = vadd.f32 %v24, %v39
    %42 = vrot.lane.b32.xlu0 %v15, 96
    %v43 = vpop.permute.xlu0 %42
    %44 = vrot.lane.b32.xlu0 %v16, 96
    %v45 = vpop.permute.xlu0 %44
    %vm46 = vcmp.lt.s32.totalorder %v30, 96
    %v47 = vsel %vm46, %v43, %v45
    %v48 = vsel %vm46, %v45, %v43
    %49 = vset.pattern.permute.xlu0 6
    %50 = vperm.xlu0 %49, %v17
    %v51 = vpop.permute.xlu0 %50
    %v53 = vmul.f32 %v47, %v51
    %v54 = vmul.f32 %v48, %v51
    %v55 = vadd.f32 %v40, %v53
    %v56 = vadd.f32 %v41, %v54
    %57 = vrot.lane.b32.xlu0 %v15, 127
    %v58 = vpop.permute.xlu0 %57
    %59 = vrot.lane.b32.xlu0 %v16, 127
    %v60 = vpop.permute.xlu0 %59
    %vm61 = vcmp.lt.s32.totalorder %v30, 127
    %v62 = vsel %vm61, %v58, %v60
    %v63 = vsel %vm61, %v60, %v58
    %64 = vset.pattern.permute.xlu0 1
    %65 = vperm.xlu0 %64, %v17
    %v66 = vpop.permute.xlu0 %65
    %v68 = vmul.f32 %v62, %v66
    %v69 = vmul.f32 %v63, %v66
    %70 = vrot.lane.b32.xlu0 %v15, 111
    %v71 = vpop.permute.xlu0 %70
    %72 = vrot.lane.b32.xlu0 %v16, 111
    %v73 = vpop.permute.xlu0 %72
    %vm74 = vcmp.lt.s32.totalorder %v30, 111
    %v75 = vsel %vm74, %v71, %v73
    %v76 = vsel %vm74, %v73, %v71
    %77 = vset.pattern.permute.xlu0 4
    %78 = vperm.xlu0 %77, %v17
    %v79 = vpop.permute.xlu0 %78
    %v81 = vmul.f32 %v75, %v79
    %v82 = vmul.f32 %v76, %v79
    %v83 = vadd.f32 %v68, %v81
    %v84 = vadd.f32 %v69, %v82
    %85 = vrot.lane.b32.xlu0 %v15, 95
    %v86 = vpop.permute.xlu0 %85
    %87 = vrot.lane.b32.xlu0 %v16, 95
    %v88 = vpop.permute.xlu0 %87
    %vm89 = vcmp.lt.s32.totalorder %v30, 95
    %v90 = vsel %vm89, %v86, %v88
    %v91 = vsel %vm89, %v88, %v86
    %92 = vset.pattern.permute.xlu0 7
    %93 = vperm.xlu0 %92, %v17
    %v94 = vpop.permute.xlu0 %93
    %v96 = vmul.f32 %v90, %v94
    %v97 = vmul.f32 %v91, %v94
    %v98 = vadd.f32 %v83, %v96
    %v99 = vadd.f32 %v84, %v97
    %100 = vrot.lane.b32.xlu0 %v15, 126
    %v101 = vpop.permute.xlu0 %100
    %102 = vrot.lane.b32.xlu0 %v16, 126
    %v103 = vpop.permute.xlu0 %102
    %vm104 = vcmp.lt.s32.totalorder %v30, 126
    %v105 = vsel %vm104, %v101, %v103
    %v106 = vsel %vm104, %v103, %v101
    %107 = vset.pattern.permute.xlu0 2
    %108 = vperm.xlu0 %107, %v17
    %v109 = vpop.permute.xlu0 %108
    %v111 = vmul.f32 %v105, %v109
    %v112 = vmul.f32 %v106, %v109
    %113 = vrot.lane.b32.xlu0 %v15, 110
    %v114 = vpop.permute.xlu0 %113
    %115 = vrot.lane.b32.xlu0 %v16, 110
    %v116 = vpop.permute.xlu0 %115
    %vm117 = vcmp.lt.s32.totalorder %v30, 110
    %v118 = vsel %vm117, %v114, %v116
    %v119 = vsel %vm117, %v116, %v114
    %120 = vset.pattern.permute.xlu0 5
    %121 = vperm.xlu0 %120, %v17
    %v122 = vpop.permute.xlu0 %121
    %v124 = vmul.f32 %v118, %v122
    %v125 = vmul.f32 %v119, %v122
    %v126 = vadd.f32 %v111, %v124
    %v127 = vadd.f32 %v112, %v125
    %128 = vrot.lane.b32.xlu0 %v15, 94
    %v129 = vpop.permute.xlu0 %128
    %130 = vrot.lane.b32.xlu0 %v16, 94
    %v131 = vpop.permute.xlu0 %130
    %vm132 = vcmp.lt.s32.totalorder %v30, 94
    %v133 = vsel %vm132, %v129, %v131
    %v134 = vsel %vm132, %v131, %v129
    %135 = vset.pattern.permute.xlu0 8
    %136 = vperm.xlu0 %135, %v17
    %v137 = vpop.permute.xlu0 %136
    %v139 = vmul.f32 %v133, %v137
    %v140 = vmul.f32 %v134, %v137
    %v141 = vadd.f32 %v126, %v139
    %v142 = vadd.f32 %v127, %v140
    %v143 = vadd.f32 %v55, %v98
    %v144 = vadd.f32 %v56, %v99
    %v145 = vadd.f32 %v143, %v141
    %v146 = vadd.f32 %v144, %v142
    %v147 = vld [vmem:[%s2] sm:$0xff]
    %v148 = vld [vmem:[%s2 + $0x8] sm:$0xff]
    %vm149 = vcmask 64512
    %v151 = vsel %vm149, %v147, 0
    %v154 = vsel %vm149, %v148, 0
    %156 = vmatprep.subr.mxu0 %v146
    %157 = vmatpush1.msra.mxu0 %v145
    %158 = vmatprep.subr.mxu0 0.0
    %159 = vmatpush1.msra.mxu0 0.0
    %160 = vmatprep.subr.mxu0 0.0
    %161 = vmatpush1.msra.mxu0 0.0
    %162 = vmatprep.subr.mxu0 0.0
    %163 = vmatpush1.msra.mxu0 0.0
    %164 = vmatprep.subr.mxu0 0.0
    %165 = vmatpush1.msra.mxu0 0.0
    %166 = vmatprep.subr.mxu0 0.0
    %167 = vmatpush1.msra.mxu0 0.0
    %168 = vmatprep.subr.mxu0 0.0
    %169 = vmatpush1.msra.mxu0 0.0
    %170 = vmatprep.subr.mxu0 0.0
    %171 = vmatpush1.msra.mxu0 0.0
    %172 = vmatprep.subr.mxu0 0.0
    %173 = vmatpush1.msra.mxu0 0.0
    %174 = vmatprep.subr.mxu0 0.0
    %175 = vmatpush1.msra.mxu0 0.0
    %176 = vmatprep.subr.mxu0 0.0
    %177 = vmatpush1.msra.mxu0 0.0
    %178 = vmatprep.subr.mxu0 0.0
    %179 = vmatpush1.msra.mxu0 0.0
    %180 = vmatprep.subr.mxu0 0.0
    %181 = vmatpush1.msra.mxu0 0.0
    %182 = vmatprep.subr.mxu0 0.0
    %183 = vmatpush1.msra.mxu0 0.0
    %184 = vmatprep.subr.mxu0 0.0
    %185 = vmatpush1.msra.mxu0 0.0
    %186 = vmatprep.subr.mxu0 0.0
    %187 = vmatpush1.msra.mxu0 0.0
    %188 = vmatprep.subr.mxu0 0.0
    %189 = vmatpush1.msra.mxu0 0.0
    %190 = vmatprep.subr.mxu0 0.0
    %191 = vmatpush1.msra.mxu0 0.0
    %192 = vmatprep.subr.mxu0 0.0
    %193 = vmatpush1.msra.mxu0 0.0
    %194 = vmatprep.subr.mxu0 0.0
    %195 = vmatpush1.msra.mxu0 0.0
    %196 = vmatprep.subr.mxu0 0.0
    %197 = vmatpush1.msra.mxu0 0.0
    %198 = vmatprep.subr.mxu0 0.0
    %199 = vmatpush1.msra.mxu0 0.0
    %200 = vmatprep.subr.mxu0 0.0
    %201 = vmatpush1.msra.mxu0 0.0
    %202 = vmatprep.subr.mxu0 0.0
    %203 = vmatpush1.msra.mxu0 0.0
    %204 = vmatprep.subr.mxu0 0.0
    %205 = vmatpush1.msra.mxu0 0.0
    %206 = vmatprep.subr.mxu0 0.0
    %207 = vmatpush1.msra.mxu0 0.0
    %208 = vmatprep.subr.mxu0 0.0
    %209 = vmatpush1.msra.mxu0 0.0
    %210 = vmatprep.subr.mxu0 0.0
    %211 = vmatpush1.msra.mxu0 0.0
    %212 = vmatprep.subr.mxu0 0.0
    %213 = vmatpush1.msra.mxu0 0.0
    %214 = vmatprep.subr.mxu0 0.0
    %215 = vmatpush1.msra.mxu0 0.0
    %216 = vmatprep.subr.mxu0 0.0
    %217 = vmatpush1.msra.mxu0 0.0
    %218 = vmatprep.subr.mxu0 0.0
    %219 = vmatpush1.msra.mxu0 0.0
    %220 = vmatprep.mubr.f32.mxu0 0.0
    %221 = vmatmul.mubr.f32.gmra.mrb[0].mxu0 %v151
    %v222 = vpop.f32.mrb[0].mxu0
    %v223 = vadd.f32 0.0, %v222
    %v224 = vpop.f32.mrb[0].mxu0
    %v225 = vadd.f32 0.0, %v224
    %226 = vmatprep.mubr.f32.mxu0 0.0
    %227 = vmatmul.mubr.f32.gmra.mrb[0].mxu0 %v154
    %v228 = vpop.f32.mrb[0].mxu0
    %v229 = vadd.f32 0.0, %v228
    %v230 = vpop.f32.mrb[0].mxu0
    %v231 = vadd.f32 0.0, %v230
    %232 = vdwg.mxu0
    %233 = vst [vmem:[#allocation2] sm:$0xff] %v223
    %234 = vst [vmem:[#allocation2 + $0x8] sm:$0xff] %v225
    %235 = vst [vmem:[#allocation2 + $0x10] sm:$0xff] %v229
    %236 = vst [vmem:[#allocation2 + $0x18] sm:$0xff] %v231
    // Predicated region
    $region14: #{tpu_custom_call.1} parent=1 // pred_check
      _
    $region15: #{tpu_custom_call.1} parent=1 // pred_check_branch
      %238 = sbr.rel (0) target = $region17
    $region16: #{tpu_custom_call.1} parent=1 // pred_region
      %s240 = ssub.s32 512, 512
      %241 = vsyncadd [#allocation3], %s240
      %s242 = sshll.u32 [#allocation2], 4
      %s243 = int_to_ptr.vmem [resolvable:$true] %s242
      %248 = dma.vmem_to_hbm [thread:$0]  %s243, 512, %s3, [#allocation3], 256, 256, 16
    $region17: #{tpu_custom_call.1} parent=1 // pred_fallthru
      _
    // Predicated region
    $region18: #{tpu_custom_call.1} parent=1 // pred_check
      _
    $region19: #{tpu_custom_call.1} parent=1 // pred_check_branch
      %250 = sbr.rel (0) target = $region21
    $region20: #{tpu_custom_call.1} parent=1 // pred_region
      %251 = dma.done [#allocation3], 512
    $region21: #{tpu_custom_call.1} parent=1 // pred_fallthru
      _
    %252 = vsyncpa [#allocation3], 1

</llo_original>
